<compile_context>
chip_gen: v7x
topology: tpu7x:2x2x1
jax: 0.10.0
libtpu: 0.0.40
codegen_flags: <defaults>
</compile_context>

<pallas_src>
import functools

import jax
import jax.numpy as jnp
from jax.experimental import pallas as pl
from jax.experimental.pallas import tpu as pltpu


_MAX_BLOCK_BYTES = 4 * 1024 * 1024    # per block; x2 arrays x2 buffers ~= 16 MiB resident
_VMEM_LIMIT_BYTES = 32 * 1024 * 1024  # explicit scoped-VMEM limit (safe on v5e/v6e/v7x)
_LANE_CAP = 8192                      # max lane (last-dim) width of the slab view


def _flatten_copy_kernel(x_ref, o_ref):
    # Identity copy of one lane-dense tile.
    o_ref[...] = x_ref[...]


def _pick_lane_width(total):
    """Largest multiple of 128 that divides `total`, capped at _LANE_CAP (0 if none)."""
    best = 0
    for lane in range(128, _LANE_CAP + 1, 128):
        if total % lane == 0:
            best = lane
    return best


def _pick_row_tile(rows, lane, itemsize):
    """Row tile: packing-aligned, VMEM-bounded, preferring an even divisor of `rows`."""
    pack = max(1, 4 // itemsize)       # sublane packing: 1 f32, 2 bf16, 4 int8/fp8
    row_align = 8 * pack
    if rows <= row_align:
        return rows                    # full extent is always a legal block dim
    budget = max(row_align, _MAX_BLOCK_BYTES // (lane * itemsize))
    budget = min(rows, budget)
    budget = max(row_align, (budget // row_align) * row_align)
    # Prefer a tile that divides rows evenly (no ragged last block); bounded search.
    cand = budget
    for _ in range(128):
        if rows % cand == 0:
            return cand
        cand -= row_align
        if cand < row_align:
            break
    return budget                      # ragged last row-block (sublane-masked only)


def _pallas_identity_copy(x2d):
    """Tiled identity copy of a lane-dense (rows, lane) slab; lane % 128 == 0."""
    rows, lane = x2d.shape
    itemsize = jnp.dtype(x2d.dtype).itemsize
    tr = _pick_row_tile(rows, lane, itemsize)
    grid = (pl.cdiv(rows, tr),)
    return pl.pallas_call(
        _flatten_copy_kernel,
        out_shape=jax.ShapeDtypeStruct((rows, lane), x2d.dtype),
        grid=grid,
        in_specs=[pl.BlockSpec((tr, lane), lambda i: (i, 0))],
        out_specs=pl.BlockSpec((tr, lane), lambda i: (i, 0)),
        cost_estimate=pl.CostEstimate(
            flops=0,
            transcendentals=0,
            bytes_accessed=2 * rows * lane * itemsize,
        ),
        compiler_params=pltpu.CompilerParams(
            dimension_semantics=("parallel",),
            vmem_limit_bytes=_VMEM_LIMIT_BYTES,
        ),
    )(x2d)


def _pallas_identity_copy_2d(x2d):
    """Fallback copy for shapes whose total element count is not a multiple of 128."""
    n, flat = x2d.shape
    itemsize = jnp.dtype(x2d.dtype).itemsize
    tf = flat if flat <= _LANE_CAP else _LANE_CAP   # full dim, or a multiple of 128
    tn = _pick_row_tile(n, tf, itemsize)
    grid = (pl.cdiv(n, tn), pl.cdiv(flat, tf))
    return pl.pallas_call(
        _flatten_copy_kernel,
        out_shape=jax.ShapeDtypeStruct((n, flat), x2d.dtype),
        grid=grid,
        in_specs=[pl.BlockSpec((tn, tf), lambda i, j: (i, j))],
        out_specs=pl.BlockSpec((tn, tf), lambda i, j: (i, j)),
        cost_estimate=pl.CostEstimate(
            flops=0,
            transcendentals=0,
            bytes_accessed=2 * n * flat * itemsize,
        ),
        compiler_params=pltpu.CompilerParams(
            dimension_semantics=("parallel", "parallel"),
            vmem_limit_bytes=_VMEM_LIMIT_BYTES,
        ),
    )(x2d)


@functools.partial(jax.jit, static_argnames=("use_pallas_copy",))
def flatten_forward(x, use_pallas_copy=True):
    """Equivalent of torch.nn.Flatten()(x): (N, d1, d2, ...) -> (N, d1*d2*...)."""
    n = x.shape[0]
    flat = 1
    for d in x.shape[1:]:
        flat *= d

    if not use_pallas_copy:
        # Optimal path: row-major flatten is a metadata-only reshape (no HBM traffic).
        return x.reshape(n, flat)

    total = n * flat
    lane = _pick_lane_width(total)
    if lane:
        # Re-view the whole buffer as a lane-dense slab (rows, lane): every block is
        # contiguous in HBM and every store is a full 128-lane-aligned vst, even for
        # tiny batch sizes where the natural (N, flat) view would give sub-(8,128) tiles.
        y = _pallas_identity_copy(x.reshape(total // lane, lane))
    else:
        # Total size not a multiple of 128: tile the natural (N, flat) view instead.
        y = _pallas_identity_copy_2d(x.reshape(n, flat))

    # Metadata-only reshape back to the nn.Flatten output shape.
    return y.reshape(n, flat)


if __name__ == "__main__":
    key = jax.random.PRNGKey(0)
    x = jax.random.normal(key, (2, 4, 16, 16), dtype=jnp.float32)

    # Reference (plain JAX flatten semantics), computed up front.
    y_ref = x.reshape(x.shape[0], -1)

    y = flatten_forward(x)
    y = jax.block_until_ready(y)

    assert y.shape == (2, 4 * 16 * 16), y.shape
    assert y.dtype == x.dtype
    assert jnp.array_equal(y, y_ref)

    # Also sanity-check the no-copy fast path.
    y_fast = jax.block_until_ready(flatten_forward(x, use_pallas_copy=False))
    assert jnp.array_equal(y_fast, y_ref)

    print("KERNEL_OK")
</pallas_src>

<mosaic_0001>
module attributes {stable_mosaic.version = 11 : i64} {
  func.func @_flatten_copy_kernel(%arg0: i32, %arg1: memref<1x2048xf32, #tpu.memory_space<vmem>>, %arg2: memref<1x2048xf32, #tpu.memory_space<vmem>>) attributes {dimension_semantics = [#tpu.dimension_semantics<parallel>], iteration_bounds = array<i64: 1>, scalar_prefetch = 0 : i64, scratch_operands = 0 : i64, tpu.core_type = #tpu.core_type<tc>, window_params = [{transform_indices = @transform_0, window_bounds = array<i64: 1, 2048>}, {transform_indices = @transform_1, window_bounds = array<i64: 1, 2048>}]} {
    %c0 = arith.constant 0 : index
    %c0_0 = arith.constant 0 : index
    %0 = vector.load %arg1[%c0, %c0_0] : memref<1x2048xf32, #tpu.memory_space<vmem>>, vector<1x2048xf32>
    %c0_1 = arith.constant 0 : index
    %c0_2 = arith.constant 0 : index
    %1 = vector.load %arg2[%c0_1, %c0_2] : memref<1x2048xf32, #tpu.memory_space<vmem>>, vector<1x2048xf32>
    tpu.vector_store %arg2[%c0_1, %c0_2], %0 {strides = array<i32>} : memref<1x2048xf32, #tpu.memory_space<vmem>>, vector<1x2048xf32>,
    return
  }
  func.func @transform_0(%arg0: i32) -> (i32, i32) {
    %c0_i32 = arith.constant 0 : i32
    %c0_i32_0 = arith.constant 0 : i32
    return %arg0, %c0_i32 : i32, i32
  }
  func.func @transform_1(%arg0: i32) -> (i32, i32) {
    %c0_i32 = arith.constant 0 : i32
    %c0_i32_0 = arith.constant 0 : i32
    return %arg0, %c0_i32 : i32, i32
  }
}

</mosaic_0001>

<llo_original>
// kernel: flatten_forward.1
$region0: #{flatten_forward.1}
  #allocation0 [shape = 'u32[]', space=smem, size = 0x4, offset = 0x4, fixed_abs, tag = 'smem constant byte address 0x4 - core index']
  #allocation1 [shape = 'u32[144,128]{1,0:T(1,128)}', space=vmem, size = 0x12000, scoped, tag = 'internal scratch']
  %s0 = inlined_call_operand.vmem [shape: f32[1,2048], index: 0, kind: input, shape index: {}]
  %s1 = inlined_call_operand.vmem [shape: f32[1,2048], index: 1, kind: output, shape index: {}]
  %s2 = sld [smem:[#allocation0]]
  $region14: #{flatten_forward.1} parent=0
    _
  %s4 = ssub.s32 1, %s2
  %s5 = scalar_select 0, %s4, %s2
  // Predicated region
  $region2: #{flatten_forward.1} parent=0 // pred_check
    _
  $region3: #{flatten_forward.1} parent=0 // pred_check_branch
    %7 = sbr.rel (0) target = $region5
  $region4: #{flatten_forward.1} parent=0 // pred_region
    _
  $region5: #{flatten_forward.1} parent=0 // pred_fallthru
    _
  %v8 = vld [vmem:[%s0] sm:$0xff]
  %v9 = vld [vmem:[%s0 + $0x8] sm:$0xff]
  %10 = vst [vmem:[%s1] sm:$0xff] %v8
  %11 = vst [vmem:[%s1 + $0x8] sm:$0xff] %v9
  // Predicated region
  $region6: #{flatten_forward.1} parent=0 // pred_check
    _
  $region7: #{flatten_forward.1} parent=0 // pred_check_branch
    %13 = sbr.rel (0) target = $region9
  $region8: #{flatten_forward.1} parent=0 // pred_region
    _
  $region9: #{flatten_forward.1} parent=0 // pred_fallthru
    _
  // Predicated region
  $region10: #{flatten_forward.1} parent=0 // pred_check
    _
  $region11: #{flatten_forward.1} parent=0 // pred_check_branch
    %15 = sbr.rel (0) target = $region13
  $region12: #{flatten_forward.1} parent=0 // pred_region
    _
  $region13: #{flatten_forward.1} parent=0 // pred_fallthru
    _

</llo_original>
